<compile_context>
chip_gen: v5e
topology: v5e:2x2
jax: 0.10.0
libtpu: 0.0.40
codegen_flags: <defaults>
</compile_context>

<pallas_src>
import numpy as np
import jax
import jax.numpy as jnp
from jax import lax
from jax.experimental import pallas as pl
from jax.experimental.pallas import tpu as pltpu

# ------------------------- configuration (small shapes) ----------------------
EMBED = 32                       # embed_dim
CLS_EMB = 2                      # class_embed_dim
HEADS = 4
DIM_HEAD = 8
INNER = HEADS * DIM_HEAD         # 32  (inner_dim)
NUM_PATCH = 16
BATCH = 8
D_IN = EMBED + CLS_EMB           # 34  (input feature dim)
D_V = INNER + CLS_EMB            # 34  (to_v output dim; to_out = Identity)
T = BATCH * NUM_PATCH            # 128 tokens; attention is global over (b n)
SCALE = DIM_HEAD ** (-0.5)

LANE = 128                       # TPU lane width
N_FUSED = 3 * LANE               # 384: cols = [ v (0:128) | q (128:256) | k (256:384) ]


# ------------------------------ Pallas kernel --------------------------------
def attention_kernel(x_ref, w_ref, o_ref):
    # x_ref: (T, D_IN)      raw tokens, no padding required for correctness
    # w_ref: (D_IN, N_FUSED) fused [v | q | k] projection; q/k on their own lane tiles,
    #                        scale pre-folded into q, class-embed rows of q/k are zero
    # o_ref: (T, D_V)       attn @ v
    x = x_ref[...]
    w = w_ref[...]

    # one fused QKV projection on the MXU
    qkv = jnp.dot(x, w, preferred_element_type=jnp.float32)        # (T, 384)
    v = qkv[:, :LANE]                # (T, 128): cols >= D_V are exactly zero
    q = qkv[:, LANE:2 * LANE]        # (T, 128): cols >= INNER are zero, scale folded in
    k = qkv[:, 2 * LANE:]            # (T, 128): cols >= INNER are zero

    # q @ k^T without materializing a transpose: contract last dims of both.
    # Zero lanes beyond INNER contribute nothing to the contraction.
    dots = lax.dot_general(
        q, k, dimension_numbers=(((1,), (1,)), ((), ())),
        preferred_element_type=jnp.float32)                        # (T, T)

    # numerically-stable softmax with deferred normalization
    dots = dots - jnp.max(dots, axis=-1, keepdims=True)
    e = jnp.exp(dots)
    s = jnp.sum(e, axis=-1, keepdims=True)                         # (T, 1)
    inv = pl.reciprocal(s, approx=False)                           # exact 1/s, row-wise

    # (unnormalized attn) @ v, then normalize only the D_V real output columns
    out = jnp.dot(e, v, preferred_element_type=jnp.float32)        # (T, 128)
    o_ref[...] = out[:, :D_V] * inv                                # (T, D_V)


# ------------------------------ wrappers --------------------------------------
def fuse_attention_weights(w_qk, w_v):
    """Build the fused projection matrix from PyTorch-layout weights.

    w_qk: (2*INNER, EMBED)  -- nn.Linear(embed_dim, inner*2, bias=False).weight
    w_v : (D_V, D_IN)       -- nn.Linear(embed_dim+cls, inner+cls, bias=False).weight

    Layout (D_IN, 384):
      cols   0:D_V        = wv                    (uses all D_IN input rows)
      cols 128:128+INNER  = wq * dim_head**-0.5   (only first EMBED rows; cls rows zero
                                                   == the x[:, :-cls] slice in the reference)
      cols 256:256+INNER  = wk                    (same zero cls rows)
    """
    wq = (w_qk[:INNER].T * SCALE).astype(jnp.float32)   # (EMBED, INNER), scale folded in
    wk = w_qk[INNER:].T.astype(jnp.float32)             # (EMBED, INNER)
    wv = w_v.T.astype(jnp.float32)                      # (D_IN, D_V)
    w = jnp.zeros((D_IN, N_FUSED), jnp.float32)
    w = w.at[:, :D_V].set(wv)
    w = w.at[:EMBED, LANE:LANE + INNER].set(wq)
    w = w.at[:EMBED, 2 * LANE:2 * LANE + INNER].set(wk)
    return w


@jax.jit
def attention_forward(x, w_fused):
    """x: (B, N, D_IN) -> (B, N, D_V), identical to Attention.forward."""
    B, N, d = x.shape
    xf = x.reshape(B * N, d).astype(jnp.float32)

    out = pl.pallas_call(
        attention_kernel,
        out_shape=jax.ShapeDtypeStruct((B * N, D_V), jnp.float32),
        in_specs=[pl.BlockSpec(memory_space=pltpu.MemorySpace.VMEM),
                  pl.BlockSpec(memory_space=pltpu.MemorySpace.VMEM)],
        out_specs=pl.BlockSpec(memory_space=pltpu.MemorySpace.VMEM),
    )(xf, w_fused)

    return out.reshape(B, N, D_V)


# --------------------------- pure-JAX reference -------------------------------
def attention_reference(x, w_qk, w_v):
    B, N, d = x.shape
    xf = x.reshape(B * N, d).astype(jnp.float32)
    qk = xf[:, :-CLS_EMB] @ w_qk.T
    q, k = qk[:, :INNER], qk[:, INNER:]
    v = xf @ w_v.T
    dots = (q @ k.T) * SCALE
    attn = jax.nn.softmax(dots, axis=-1)
    out = attn @ v
    return out.reshape(B, N, D_V)


# ---------------------------------- main --------------------------------------
if __name__ == "__main__":
    key = jax.random.PRNGKey(0)
    kx, kqk, kv = jax.random.split(key, 3)

    x = jax.random.normal(kx, (BATCH, NUM_PATCH, D_IN), jnp.float32)
    w_qk = (0.02 * jax.random.normal(kqk, (2 * INNER, EMBED))).astype(jnp.float32)
    w_v = (0.02 * jax.random.normal(kv, (D_V, D_IN))).astype(jnp.float32)

    w_fused = fuse_attention_weights(w_qk, w_v)

    out = attention_forward(x, w_fused)
    out = jax.block_until_ready(out)

    ref = jax.block_until_ready(attention_reference(x, w_qk, w_v))
    np.testing.assert_allclose(np.asarray(out), np.asarray(ref), atol=2e-3, rtol=1e-2)
    assert np.all(np.isfinite(np.asarray(out))), "output is not finite"
    # TODO(synk): nn.Dropout (p=0.0) and to_out=Identity are no-ops and are omitted.
    print("KERNEL_OK")
</pallas_src>

<mosaic_0001>
module attributes {stable_mosaic.version = 11 : i64} {
  func.func @attention_kernel(%arg0: memref<128x34xf32, #tpu.memory_space<vmem>>, %arg1: memref<34x384xf32, #tpu.memory_space<vmem>>, %arg2: memref<128x34xf32, #tpu.memory_space<vmem>>) attributes {dimension_semantics = [], scalar_prefetch = 0 : i64, scratch_operands = 0 : i64, tpu.core_type = #tpu.core_type<tc>} {
    %c0 = arith.constant 0 : index
    %c0_0 = arith.constant 0 : index
    %0 = vector.load %arg0[%c0, %c0_0] : memref<128x34xf32, #tpu.memory_space<vmem>>, vector<128x34xf32>
    %c0_1 = arith.constant 0 : index
    %c0_2 = arith.constant 0 : index
    %1 = vector.load %arg1[%c0_1, %c0_2] : memref<34x384xf32, #tpu.memory_space<vmem>>, vector<34x384xf32>
    %cst = arith.constant dense<0.000000e+00> : vector<128x384xf32>
    %2 = tpu.matmul %0, %1, %cst {dimension_numbers = #tpu.dot_dimension_numbers<[1], [0], [0], [1], [0, 0, 1, 1], [], []>} : vector<128x34xf32>, vector<34x384xf32>, vector<128x384xf32> -> vector<128x384xf32>
    %3 = vector.extract_strided_slice %2 {offsets = [0, 0], sizes = [128, 128], strides = [1, 1]} : vector<128x384xf32> to vector<128x128xf32>
    %4 = vector.extract_strided_slice %2 {offsets = [0, 128], sizes = [128, 128], strides = [1, 1]} : vector<128x384xf32> to vector<128x128xf32>
    %5 = vector.extract_strided_slice %2 {offsets = [0, 256], sizes = [128, 128], strides = [1, 1]} : vector<128x384xf32> to vector<128x128xf32>
    %cst_3 = arith.constant dense<0.000000e+00> : vector<128x128xf32>
    %6 = tpu.matmul %4, %5, %cst_3 {dimension_numbers = #tpu.dot_dimension_numbers<[1], [1], [0], [0], [0, 0, 1, 0], [], []>} : vector<128x128xf32>, vector<128x128xf32>, vector<128x128xf32> -> vector<128x128xf32>
    %cst_4 = arith.constant dense<0xFF800000> : vector<128xf32>
    %7 = vector.multi_reduction <maximumf>, %6, %cst_4 [1] : vector<128x128xf32> to vector<128xf32>
    %8 = vector.shape_cast %7 : vector<128xf32> to vector<128x1xf32>
    %9 = vector.broadcast %8 : vector<128x1xf32> to vector<128x128xf32>
    %10 = arith.subf %6, %9 : vector<128x128xf32>
    %11 = math.exp %10 : vector<128x128xf32>
    %cst_5 = arith.constant dense<0.000000e+00> : vector<128xf32>
    %12 = vector.multi_reduction <add>, %11, %cst_5 [1] : vector<128x128xf32> to vector<128xf32>
    %13 = vector.shape_cast %12 : vector<128xf32> to vector<128x1xf32>
    %14 = tpu.reciprocal %13 : vector<128x1xf32> -> vector<128x1xf32>
    %cst_6 = arith.constant dense<0.000000e+00> : vector<128x128xf32>
    %15 = tpu.matmul %11, %3, %cst_6 {dimension_numbers = #tpu.dot_dimension_numbers<[1], [0], [0], [1], [0, 0, 1, 1], [], []>} : vector<128x128xf32>, vector<128x128xf32>, vector<128x128xf32> -> vector<128x128xf32>
    %16 = vector.extract_strided_slice %15 {offsets = [0, 0], sizes = [128, 34], strides = [1, 1]} : vector<128x128xf32> to vector<128x34xf32>
    %17 = vector.broadcast %14 : vector<128x1xf32> to vector<128x34xf32>
    %18 = arith.mulf %16, %17 : vector<128x34xf32>
    %c0_7 = arith.constant 0 : index
    %c0_8 = arith.constant 0 : index
    %19 = vector.load %arg2[%c0_7, %c0_8] : memref<128x34xf32, #tpu.memory_space<vmem>>, vector<128x34xf32>
    tpu.vector_store %arg2[%c0_7, %c0_8], %18 {strides = array<i32>} : memref<128x34xf32, #tpu.memory_space<vmem>>, vector<128x34xf32>,
    return
  }
}

</mosaic_0001>

<llo_original>
// kernel: attention_forward.1
$region0: #{attention_forward.1}
  #allocation0 [shape = 'u32[]', space=smem, size = 0x4, offset = 0x4, fixed_abs, tag = 'smem constant byte address 0x4 - core index']
  #allocation1 [shape = 'u32[72,128]{1,0:T(1,128)}', space=vmem, size = 0x9000, scoped, tag = 'internal scratch']
  %s0 = inlined_call_operand.hbm [shape: f32[128,34], index: 0, kind: input, shape index: {}]
  %s1 = inlined_call_operand.hbm [shape: f32[34,384], index: 1, kind: input, shape index: {}]
  %s2 = inlined_call_operand.hbm [shape: f32[128,34], index: 2, kind: output, shape index: {}]
  %s3 = sld [smem:[#allocation0]]
  $region26: #{attention_forward.1} parent=0
    _
  %s5 = ssub.s32 1, %s3
  %s6 = scalar_select 0, %s5, %s3
  $region1: #{attention_forward.1} parent=0
    #allocation2 [shape = 'u8[65536]{0}', space=vmem, size = 0x10000, scoped, tag = 'input window, operand 0, single buffered']
    #allocation3 [shape = 's32[1]{0}', space=sflag, size = 0x4, scoped, tag = 'scoped memory for attention_forward.1']
    #allocation4 [shape = 's32[1]{0}', space=sflag, size = 0x4, scoped, tag = 'scoped memory for attention_forward.1']
    #allocation5 [shape = 'u8[61440]{0}', space=vmem, size = 0xf000, scoped, tag = 'input window, operand 1, single buffered']
    #allocation6 [shape = 's32[1]{0}', space=sflag, size = 0x4, scoped, tag = 'scoped memory for attention_forward.1']
    #allocation7 [shape = 'u8[65536]{0}', space=vmem, size = 0x10000, scoped, tag = 'output window, operand 0, single buffered']
    %7 = vsyncpa [#allocation3], 0
    %8 = vsyncpa [#allocation6], 0
    %9 = vsyncpa [#allocation4], 0
    // Predicated region
    $region2: #{attention_forward.1} parent=1 // pred_check
      _
    $region3: #{attention_forward.1} parent=1 // pred_check_branch
      %11 = sbr.rel (0) target = $region5
    $region4: #{attention_forward.1} parent=1 // pred_region
      %13 = vsyncadd [#allocation3], 0
      %s14 = sshll.u32 %s0, 4
      %s15 = int_to_ptr.hbm [resolvable:$true] %s14
      %s16 = sshll.u32 [#allocation2], 4
      %s17 = int_to_ptr.vmem [resolvable:$true] %s16
      %22 = dma.hbm_to_vmem [thread:$0]  %s15, 2048, %s17, [#allocation3], 128, 128, 8
    $region5: #{attention_forward.1} parent=1 // pred_fallthru
      _
    // Predicated region
    $region6: #{attention_forward.1} parent=1 // pred_check
      _
    $region7: #{attention_forward.1} parent=1 // pred_check_branch
      %24 = sbr.rel (0) target = $region9
    $region8: #{attention_forward.1} parent=1 // pred_region
      %26 = vsyncadd [#allocation6], 0
      %s27 = sshll.u32 %s1, 4
      %s28 = int_to_ptr.hbm [resolvable:$true] %s27
      %s29 = sshll.u32 [#allocation5], 4
      %s30 = int_to_ptr.vmem [resolvable:$true] %s29
      %35 = dma.hbm_to_vmem [thread:$0]  %s28, 1920, %s30, [#allocation6], 384, 384, 24
    $region9: #{attention_forward.1} parent=1 // pred_fallthru
      _
    // Predicated region
    $region10: #{attention_forward.1} parent=1 // pred_check
      _
    $region11: #{attention_forward.1} parent=1 // pred_check_branch
      %37 = sbr.rel (0) target = $region13
    $region12: #{attention_forward.1} parent=1 // pred_region
      %39 = dma.done [#allocation3], 2048
    $region13: #{attention_forward.1} parent=1 // pred_fallthru
      _
    // Predicated region
    $region14: #{attention_forward.1} parent=1 // pred_check
      _
    $region15: #{attention_forward.1} parent=1 // pred_check_branch
      %41 = sbr.rel (0) target = $region17
    $region16: #{attention_forward.1} parent=1 // pred_region
      %43 = dma.done [#allocation6], 1920
    $region17: #{attention_forward.1} parent=1 // pred_fallthru
      _
    %v44 = vld [vmem:[#allocation2] sm:$0xff]
    %v45 = vld [vmem:[#allocation2 + $0x8] sm:$0xff]
    %v46 = vld [vmem:[#allocation2 + $0x10] sm:$0xff]
    %v47 = vld [vmem:[#allocation2 + $0x18] sm:$0xff]
    %v48 = vld [vmem:[#allocation2 + $0x20] sm:$0xff]
    %v49 = vld [vmem:[#allocation2 + $0x28] sm:$0xff]
    %v50 = vld [vmem:[#allocation2 + $0x30] sm:$0xff]
    %v51 = vld [vmem:[#allocation2 + $0x38] sm:$0xff]
    %v52 = vld [vmem:[#allocation2 + $0x40] sm:$0xff]
    %v53 = vld [vmem:[#allocation2 + $0x48] sm:$0xff]
    %v54 = vld [vmem:[#allocation2 + $0x50] sm:$0xff]
    %v55 = vld [vmem:[#allocation2 + $0x58] sm:$0xff]
    %v56 = vld [vmem:[#allocation2 + $0x60] sm:$0xff]
    %v57 = vld [vmem:[#allocation2 + $0x68] sm:$0xff]
    %v58 = vld [vmem:[#allocation2 + $0x70] sm:$0xff]
    %v59 = vld [vmem:[#allocation2 + $0x78] sm:$0xff]
    %v60 = vld [vmem:[#allocation5] sm:$0xff]
    %v61 = vld [vmem:[#allocation5 + $0x8] sm:$0xff]
    %v62 = vld [vmem:[#allocation5 + $0x10] sm:$0xff]
    %v63 = vld [vmem:[#allocation5 + $0x18] sm:$0xff]
    %v64 = vld [vmem:[#allocation5 + $0x20] sm:$0xff]
    %v65 = vld [vmem:[#allocation5 + $0x28] sm:$0xff]
    %v66 = vld [vmem:[#allocation5 + $0x30] sm:$0xff]
    %v67 = vld [vmem:[#allocation5 + $0x38] sm:$0xff]
    %v68 = vld [vmem:[#allocation5 + $0x40] sm:$0xff]
    %v69 = vld [vmem:[#allocation5 + $0x48] sm:$0xff]
    %v70 = vld [vmem:[#allocation5 + $0x50] sm:$0xff]
    %v71 = vld [vmem:[#allocation5 + $0x58] sm:$0xff]
    %v72 = vld [vmem:[#allocation5 + $0x60] sm:$0x3]
    %v73 = vld [vmem:[#allocation5 + $0x68] sm:$0x3]
    %v74 = vld [vmem:[#allocation5 + $0x70] sm:$0x3]
    %vm75 = vcmask 277504
    %v77 = vsel %vm75, %v44, 0
    %v80 = vsel %vm75, %v45, 0
    %v83 = vsel %vm75, %v46, 0
    %v86 = vsel %vm75, %v47, 0
    %v89 = vsel %vm75, %v48, 0
    %v92 = vsel %vm75, %v49, 0
    %v95 = vsel %vm75, %v50, 0
    %v98 = vsel %vm75, %v51, 0
    %v101 = vsel %vm75, %v52, 0
    %v104 = vsel %vm75, %v53, 0
    %v107 = vsel %vm75, %v54, 0
    %v110 = vsel %vm75, %v55, 0
    %v113 = vsel %vm75, %v56, 0
    %v116 = vsel %vm75, %v57, 0
    %v119 = vsel %vm75, %v58, 0
    %v122 = vsel %vm75, %v59, 0
    %vm124 = vcmask 1041408
    %v126 = vsel %vm124, %v72, 0
    %v129 = vsel %vm124, %v73, 0
    %v132 = vsel %vm124, %v74, 0
    %134 = vmatpush.msra.mxu0 0.0
    %135 = vmatpush.msra.mxu0 0.0
    %136 = vmatpush.msra.mxu0 0.0
    %137 = vmatpush.msra.mxu0 0.0
    %138 = vmatpush.msra.mxu0 0.0
    %139 = vmatpush.msra.mxu0 0.0
    %140 = vmatpush.msra.mxu0 0.0
    %141 = vmatpush.msra.mxu0 0.0
    %142 = vmatpush.msra.mxu0 0.0
    %143 = vmatpush.msra.mxu0 0.0
    %144 = vmatpush.msra.mxu0 0.0
    %145 = vmatpush.msra.mxu0 %v126
    %146 = vmatpush.msra.mxu0 %v69
    %147 = vmatpush.msra.mxu0 %v66
    %148 = vmatpush.msra.mxu0 %v63
    %149 = vmatpush.msra.mxu0 %v60
    %150 = vmatmul.f32.gmra.mxu0 %v77
    %v151 = vpop.f32.mrf.mxu0
    %v152 = vadd.f32 0.0, %v151
    %153 = vmatmul.f32.gmra.mxu0 %v80
    %v154 = vpop.f32.mrf.mxu0
    %v155 = vadd.f32 0.0, %v154
    %156 = vmatmul.f32.gmra.mxu0 %v83
    %v157 = vpop.f32.mrf.mxu0
    %v158 = vadd.f32 0.0, %v157
    %159 = vmatmul.f32.gmra.mxu0 %v86
    %v160 = vpop.f32.mrf.mxu0
    %v161 = vadd.f32 0.0, %v160
    %162 = vmatmul.f32.gmra.mxu0 %v89
    %v163 = vpop.f32.mrf.mxu0
    %v164 = vadd.f32 0.0, %v163
    %165 = vmatmul.f32.gmra.mxu0 %v92
    %v166 = vpop.f32.mrf.mxu0
    %v167 = vadd.f32 0.0, %v166
    %168 = vmatmul.f32.gmra.mxu0 %v95
    %v169 = vpop.f32.mrf.mxu0
    %v170 = vadd.f32 0.0, %v169
    %171 = vmatmul.f32.gmra.mxu0 %v98
    %v172 = vpop.f32.mrf.mxu0
    %v173 = vadd.f32 0.0, %v172
    %174 = vmatmul.f32.gmra.mxu0 %v101
    %v175 = vpop.f32.mrf.mxu0
    %v176 = vadd.f32 0.0, %v175
    %177 = vmatmul.f32.gmra.mxu0 %v104
    %v178 = vpop.f32.mrf.mxu0
    %v179 = vadd.f32 0.0, %v178
    %180 = vmatmul.f32.gmra.mxu0 %v107
    %v181 = vpop.f32.mrf.mxu0
    %v182 = vadd.f32 0.0, %v181
    %183 = vmatmul.f32.gmra.mxu0 %v110
    %v184 = vpop.f32.mrf.mxu0
    %v185 = vadd.f32 0.0, %v184
    %186 = vmatmul.f32.gmra.mxu0 %v113
    %v187 = vpop.f32.mrf.mxu0
    %v188 = vadd.f32 0.0, %v187
    %189 = vmatmul.f32.gmra.mxu0 %v116
    %v190 = vpop.f32.mrf.mxu0
    %v191 = vadd.f32 0.0, %v190
    %192 = vmatmul.f32.gmra.mxu0 %v119
    %v193 = vpop.f32.mrf.mxu0
    %v194 = vadd.f32 0.0, %v193
    %195 = vmatmul.f32.gmra.mxu0 %v122
    %v196 = vpop.f32.mrf.mxu0
    %v197 = vadd.f32 0.0, %v196
    %198 = vdwg.mxu0
    %199 = vmatpush.msra.mxu0 0.0
    %200 = vmatpush.msra.mxu0 0.0
    %201 = vmatpush.msra.mxu0 0.0
    %202 = vmatpush.msra.mxu0 0.0
    %203 = vmatpush.msra.mxu0 0.0
    %204 = vmatpush.msra.mxu0 0.0
    %205 = vmatpush.msra.mxu0 0.0
    %206 = vmatpush.msra.mxu0 0.0
    %207 = vmatpush.msra.mxu0 0.0
    %208 = vmatpush.msra.mxu0 0.0
    %209 = vmatpush.msra.mxu0 0.0
    %210 = vmatpush.msra.mxu0 %v129
    %211 = vmatpush.msra.mxu0 %v70
    %212 = vmatpush.msra.mxu0 %v67
    %213 = vmatpush.msra.mxu0 %v64
    %214 = vmatpush.msra.mxu0 %v61
    %215 = vmatmul.f32.gmra.mxu0 %v77
    %v216 = vpop.f32.mrf.mxu0
    %v217 = vadd.f32 0.0, %v216
    %218 = vmatmul.f32.gmra.mxu0 %v80
    %v219 = vpop.f32.mrf.mxu0
    %v220 = vadd.f32 0.0, %v219
    %221 = vmatmul.f32.gmra.mxu0 %v83
    %v222 = vpop.f32.mrf.mxu0
    %v223 = vadd.f32 0.0, %v222
    %224 = vmatmul.f32.gmra.mxu0 %v86
    %v225 = vpop.f32.mrf.mxu0
    %v226 = vadd.f32 0.0, %v225
    %227 = vmatmul.f32.gmra.mxu0 %v89
    %v228 = vpop.f32.mrf.mxu0
    %v229 = vadd.f32 0.0, %v228
    %230 = vmatmul.f32.gmra.mxu0 %v92
    %v231 = vpop.f32.mrf.mxu0
    %v232 = vadd.f32 0.0, %v231
    %233 = vmatmul.f32.gmra.mxu0 %v95
    %v234 = vpop.f32.mrf.mxu0
    %v235 = vadd.f32 0.0, %v234
    %236 = vmatmul.f32.gmra.mxu0 %v98
    %v237 = vpop.f32.mrf.mxu0
    %v238 = vadd.f32 0.0, %v237
    %239 = vmatmul.f32.gmra.mxu0 %v101
    %v240 = vpop.f32.mrf.mxu0
    %v241 = vadd.f32 0.0, %v240
    %242 = vmatmul.f32.gmra.mxu0 %v104
    %v243 = vpop.f32.mrf.mxu0
    %v244 = vadd.f32 0.0, %v243
    %245 = vmatmul.f32.gmra.mxu0 %v107
    %v246 = vpop.f32.mrf.mxu0
    %v247 = vadd.f32 0.0, %v246
    %248 = vmatmul.f32.gmra.mxu0 %v110
    %v249 = vpop.f32.mrf.mxu0
    %v250 = vadd.f32 0.0, %v249
    %251 = vmatmul.f32.gmra.mxu0 %v113
    %v252 = vpop.f32.mrf.mxu0
    %v253 = vadd.f32 0.0, %v252
    %254 = vmatmul.f32.gmra.mxu0 %v116
    %v255 = vpop.f32.mrf.mxu0
    %v256 = vadd.f32 0.0, %v255
    %257 = vmatmul.f32.gmra.mxu0 %v119
    %v258 = vpop.f32.mrf.mxu0
    %v259 = vadd.f32 0.0, %v258
    %260 = vmatmul.f32.gmra.mxu0 %v122
    %v261 = vpop.f32.mrf.mxu0
    %v262 = vadd.f32 0.0, %v261
    %263 = vdwg.mxu0
    %264 = vmatpush.msra.mxu0 0.0
    %265 = vmatpush.msra.mxu0 0.0
    %266 = vmatpush.msra.mxu0 0.0
    %267 = vmatpush.msra.mxu0 0.0
    %268 = vmatpush.msra.mxu0 0.0
    %269 = vmatpush.msra.mxu0 0.0
    %270 = vmatpush.msra.mxu0 0.0
    %271 = vmatpush.msra.mxu0 0.0
    %272 = vmatpush.msra.mxu0 0.0
    %273 = vmatpush.msra.mxu0 0.0
    %274 = vmatpush.msra.mxu0 0.0
    %275 = vmatpush.msra.mxu0 %v132
    %276 = vmatpush.msra.mxu0 %v71
    %277 = vmatpush.msra.mxu0 %v68
    %278 = vmatpush.msra.mxu0 %v65
    %279 = vmatpush.msra.mxu0 %v62
    %280 = vmatmul.f32.gmra.mxu0 %v77
    %v281 = vpop.f32.mrf.mxu0
    %v282 = vadd.f32 0.0, %v281
    %283 = vmatmul.f32.gmra.mxu0 %v80
    %v284 = vpop.f32.mrf.mxu0
    %v285 = vadd.f32 0.0, %v284
    %286 = vmatmul.f32.gmra.mxu0 %v83
    %v287 = vpop.f32.mrf.mxu0
    %v288 = vadd.f32 0.0, %v287
    %289 = vmatmul.f32.gmra.mxu0 %v86
    %v290 = vpop.f32.mrf.mxu0
    %v291 = vadd.f32 0.0, %v290
    %292 = vmatmul.f32.gmra.mxu0 %v89
    %v293 = vpop.f32.mrf.mxu0
    %v294 = vadd.f32 0.0, %v293
    %295 = vmatmul.f32.gmra.mxu0 %v92
    %v296 = vpop.f32.mrf.mxu0
    %v297 = vadd.f32 0.0, %v296
    %298 = vmatmul.f32.gmra.mxu0 %v95
    %v299 = vpop.f32.mrf.mxu0
    %v300 = vadd.f32 0.0, %v299
    %301 = vmatmul.f32.gmra.mxu0 %v98
    %v302 = vpop.f32.mrf.mxu0
    %v303 = vadd.f32 0.0, %v302
    %304 = vmatmul.f32.gmra.mxu0 %v101
    %v305 = vpop.f32.mrf.mxu0
    %v306 = vadd.f32 0.0, %v305
    %307 = vmatmul.f32.gmra.mxu0 %v104
    %v308 = vpop.f32.mrf.mxu0
    %v309 = vadd.f32 0.0, %v308
    %310 = vmatmul.f32.gmra.mxu0 %v107
    %v311 = vpop.f32.mrf.mxu0
    %v312 = vadd.f32 0.0, %v311
    %313 = vmatmul.f32.gmra.mxu0 %v110
    %v314 = vpop.f32.mrf.mxu0
    %v315 = vadd.f32 0.0, %v314
    %316 = vmatmul.f32.gmra.mxu0 %v113
    %v317 = vpop.f32.mrf.mxu0
    %v318 = vadd.f32 0.0, %v317
    %319 = vmatmul.f32.gmra.mxu0 %v116
    %v320 = vpop.f32.mrf.mxu0
    %v321 = vadd.f32 0.0, %v320
    %322 = vmatmul.f32.gmra.mxu0 %v119
    %v323 = vpop.f32.mrf.mxu0
    %v324 = vadd.f32 0.0, %v323
    %325 = vmatmul.f32.gmra.mxu0 %v122
    %v326 = vpop.f32.mrf.mxu0
    %v327 = vadd.f32 0.0, %v326
    %328 = vdwg.mxu0
    %329 = vmatpush.xpose.msra.mxu0 %v327
    %330 = vmatpush.xpose.msra.mxu0 %v324
    %331 = vmatpush.xpose.msra.mxu0 %v321
    %332 = vmatpush.xpose.msra.mxu0 %v318
    %333 = vmatpush.xpose.msra.mxu0 %v315
    %334 = vmatpush.xpose.msra.mxu0 %v312
    %335 = vmatpush.xpose.msra.mxu0 %v309
    %336 = vmatpush.xpose.msra.mxu0 %v306
    %337 = vmatpush.xpose.msra.mxu0 %v303
    %338 = vmatpush.xpose.msra.mxu0 %v300
    %339 = vmatpush.xpose.msra.mxu0 %v297
    %340 = vmatpush.xpose.msra.mxu0 %v294
    %341 = vmatpush.xpose.msra.mxu0 %v291
    %342 = vmatpush.xpose.msra.mxu0 %v288
    %343 = vmatpush.xpose.msra.mxu0 %v285
    %344 = vmatpush.xpose.msra.mxu0 %v282
    %345 = vmatmul.f32.gmra.mxu0 %v217
    %v346 = vpop.f32.mrf.mxu0
    %v347 = vadd.f32 0.0, %v346
    %348 = vmatmul.f32.gmra.mxu0 %v220
    %v349 = vpop.f32.mrf.mxu0
    %v350 = vadd.f32 0.0, %v349
    %351 = vmatmul.f32.gmra.mxu0 %v223
    %v352 = vpop.f32.mrf.mxu0
    %v353 = vadd.f32 0.0, %v352
    %354 = vmatmul.f32.gmra.mxu0 %v226
    %v355 = vpop.f32.mrf.mxu0
    %v356 = vadd.f32 0.0, %v355
    %357 = vmatmul.f32.gmra.mxu0 %v229
    %v358 = vpop.f32.mrf.mxu0
    %v359 = vadd.f32 0.0, %v358
    %360 = vmatmul.f32.gmra.mxu0 %v232
    %v361 = vpop.f32.mrf.mxu0
    %v362 = vadd.f32 0.0, %v361
    %363 = vmatmul.f32.gmra.mxu0 %v235
    %v364 = vpop.f32.mrf.mxu0
    %v365 = vadd.f32 0.0, %v364
    %366 = vmatmul.f32.gmra.mxu0 %v238
    %v367 = vpop.f32.mrf.mxu0
    %v368 = vadd.f32 0.0, %v367
    %369 = vmatmul.f32.gmra.mxu0 %v241
    %v370 = vpop.f32.mrf.mxu0
    %v371 = vadd.f32 0.0, %v370
    %372 = vmatmul.f32.gmra.mxu0 %v244
    %v373 = vpop.f32.mrf.mxu0
    %v374 = vadd.f32 0.0, %v373
    %375 = vmatmul.f32.gmra.mxu0 %v247
    %v376 = vpop.f32.mrf.mxu0
    %v377 = vadd.f32 0.0, %v376
    %378 = vmatmul.f32.gmra.mxu0 %v250
    %v379 = vpop.f32.mrf.mxu0
    %v380 = vadd.f32 0.0, %v379
    %381 = vmatmul.f32.gmra.mxu0 %v253
    %v382 = vpop.f32.mrf.mxu0
    %v383 = vadd.f32 0.0, %v382
    %384 = vmatmul.f32.gmra.mxu0 %v256
    %v385 = vpop.f32.mrf.mxu0
    %v386 = vadd.f32 0.0, %v385
    %387 = vmatmul.f32.gmra.mxu0 %v259
    %v388 = vpop.f32.mrf.mxu0
    %v389 = vadd.f32 0.0, %v388
    %390 = vmatmul.f32.gmra.mxu0 %v262
    %v391 = vpop.f32.mrf.mxu0
    %v392 = vadd.f32 0.0, %v391
    %393 = vdwg.mxu0
    %394 = vmax.xlane.f32.xlu0 %v347
    %v395 = vpop.xlane.xlu0 %394
    %396 = vmax.xlane.f32.xlu0 %v350
    %v397 = vpop.xlane.xlu0 %396
    %398 = vmax.xlane.f32.xlu0 %v353
    %v399 = vpop.xlane.xlu0 %398
    %400 = vmax.xlane.f32.xlu0 %v356
    %v401 = vpop.xlane.xlu0 %400
    %402 = vmax.xlane.f32.xlu0 %v359
    %v403 = vpop.xlane.xlu0 %402
    %404 = vmax.xlane.f32.xlu0 %v362
    %v405 = vpop.xlane.xlu0 %404
    %406 = vmax.xlane.f32.xlu0 %v365
    %v407 = vpop.xlane.xlu0 %406
    %408 = vmax.xlane.f32.xlu0 %v368
    %v409 = vpop.xlane.xlu0 %408
    %410 = vmax.xlane.f32.xlu0 %v371
    %v411 = vpop.xlane.xlu0 %410
    %412 = vmax.xlane.f32.xlu0 %v374
    %v413 = vpop.xlane.xlu0 %412
    %414 = vmax.xlane.f32.xlu0 %v377
    %v415 = vpop.xlane.xlu0 %414
    %416 = vmax.xlane.f32.xlu0 %v380
    %v417 = vpop.xlane.xlu0 %416
    %418 = vmax.xlane.f32.xlu0 %v383
    %v419 = vpop.xlane.xlu0 %418
    %420 = vmax.xlane.f32.xlu0 %v386
    %v421 = vpop.xlane.xlu0 %420
    %422 = vmax.xlane.f32.xlu0 %v389
    %v423 = vpop.xlane.xlu0 %422
    %424 = vmax.xlane.f32.xlu0 %v392
    %v425 = vpop.xlane.xlu0 %424
    %v426 = vsub.f32 %v347, %v395
    %v427 = vsub.f32 %v350, %v397
    %v428 = vsub.f32 %v353, %v399
    %v429 = vsub.f32 %v356, %v401
    %v430 = vsub.f32 %v359, %v403
    %v431 = vsub.f32 %v362, %v405
    %v432 = vsub.f32 %v365, %v407
    %v433 = vsub.f32 %v368, %v409
    %v434 = vsub.f32 %v371, %v411
    %v435 = vsub.f32 %v374, %v413
    %v436 = vsub.f32 %v377, %v415
    %v437 = vsub.f32 %v380, %v417
    %v438 = vsub.f32 %v383, %v419
    %v439 = vsub.f32 %v386, %v421
    %v440 = vsub.f32 %v389, %v423
    %v441 = vsub.f32 %v392, %v425
    %v442 = vmul.f32 %v426, 1.442695
    %v443 = vpow.pop %v442
    %v444 = vmul.f32 %v427, 1.442695
    %v445 = vpow.pop %v444
    %v446 = vmul.f32 %v428, 1.442695
    %v447 = vpow.pop %v446
    %v448 = vmul.f32 %v429, 1.442695
    %v449 = vpow.pop %v448
    %v450 = vmul.f32 %v430, 1.442695
    %v451 = vpow.pop %v450
    %v452 = vmul.f32 %v431, 1.442695
    %v453 = vpow.pop %v452
    %v454 = vmul.f32 %v432, 1.442695
    %v455 = vpow.pop %v454
    %v456 = vmul.f32 %v433, 1.442695
    %v457 = vpow.pop %v456
    %v458 = vmul.f32 %v434, 1.442695
    %v459 = vpow.pop %v458
    %v460 = vmul.f32 %v435, 1.442695
    %v461 = vpow.pop %v460
    %v462 = vmul.f32 %v436, 1.442695
    %v463 = vpow.pop %v462
    %v464 = vmul.f32 %v437, 1.442695
    %v465 = vpow.pop %v464
    %v466 = vmul.f32 %v438, 1.442695
    %v467 = vpow.pop %v466
    %v468 = vmul.f32 %v439, 1.442695
    %v469 = vpow.pop %v468
    %v470 = vmul.f32 %v440, 1.442695
    %v471 = vpow.pop %v470
    %v472 = vmul.f32 %v441, 1.442695
    %v473 = vpow.pop %v472
    %474 = vadd.xlane.f32.xlu0 %v443
    %v475 = vpop.xlane.xlu0 %474
    %476 = vadd.xlane.f32.xlu0 %v445
    %v477 = vpop.xlane.xlu0 %476
    %478 = vadd.xlane.f32.xlu0 %v447
    %v479 = vpop.xlane.xlu0 %478
    %480 = vadd.xlane.f32.xlu0 %v449
    %v481 = vpop.xlane.xlu0 %480
    %482 = vadd.xlane.f32.xlu0 %v451
    %v483 = vpop.xlane.xlu0 %482
    %484 = vadd.xlane.f32.xlu0 %v453
    %v485 = vpop.xlane.xlu0 %484
    %486 = vadd.xlane.f32.xlu0 %v455
    %v487 = vpop.xlane.xlu0 %486
    %488 = vadd.xlane.f32.xlu0 %v457
    %v489 = vpop.xlane.xlu0 %488
    %490 = vadd.xlane.f32.xlu0 %v459
    %v491 = vpop.xlane.xlu0 %490
    %492 = vadd.xlane.f32.xlu0 %v461
    %v493 = vpop.xlane.xlu0 %492
    %494 = vadd.xlane.f32.xlu0 %v463
    %v495 = vpop.xlane.xlu0 %494
    %496 = vadd.xlane.f32.xlu0 %v465
    %v497 = vpop.xlane.xlu0 %496
    %498 = vadd.xlane.f32.xlu0 %v467
    %v499 = vpop.xlane.xlu0 %498
    %500 = vadd.xlane.f32.xlu0 %v469
    %v501 = vpop.xlane.xlu0 %500
    %502 = vadd.xlane.f32.xlu0 %v471
    %v503 = vpop.xlane.xlu0 %502
    %504 = vadd.xlane.f32.xlu0 %v473
    %v505 = vpop.xlane.xlu0 %504
    %v506 = vrcp.pop %v475
    %v507 = vmul.f32 %v475, %v506
    %v508 = vsub.f32 1.0, %v507
    %v509 = vmul.f32 %v506, %v508
    %v510 = vadd.f32 %v506, %v509
    %vm511 = vweird.f32 %v475
    %vm512 = vweird.f32 %v506
    %vm513 = vmor %vm511, %vm512
    %v514 = vsel %vm513, %v506, %v510
    %v515 = vand.u32 2147483647, %v475
    %vm516 = vcmp.eq.f32.partialorder %v515, 8.507059e+37
    %v517 = vand.u32 %v475, 2147483648
    %v518 = vor.u32 1.1754944e-38, %v517
    %v519 = vsel %vm516, %v518, %v514
    %v520 = vrcp.pop %v477
    %v521 = vmul.f32 %v477, %v520
    %v522 = vsub.f32 1.0, %v521
    %v523 = vmul.f32 %v520, %v522
    %v524 = vadd.f32 %v520, %v523
    %vm525 = vweird.f32 %v477
    %vm526 = vweird.f32 %v520
    %vm527 = vmor %vm525, %vm526
    %v528 = vsel %vm527, %v520, %v524
    %v529 = vand.u32 2147483647, %v477
    %vm530 = vcmp.eq.f32.partialorder %v529, 8.507059e+37
    %v531 = vand.u32 %v477, 2147483648
    %v532 = vor.u32 1.1754944e-38, %v531
    %v533 = vsel %vm530, %v532, %v528
    %v534 = vrcp.pop %v479
    %v535 = vmul.f32 %v479, %v534
    %v536 = vsub.f32 1.0, %v535
    %v537 = vmul.f32 %v534, %v536
    %v538 = vadd.f32 %v534, %v537
    %vm539 = vweird.f32 %v479
    %vm540 = vweird.f32 %v534
    %vm541 = vmor %vm539, %vm540
    %v542 = vsel %vm541, %v534, %v538
    %v543 = vand.u32 2147483647, %v479
    %vm544 = vcmp.eq.f32.partialorder %v543, 8.507059e+37
    %v545 = vand.u32 %v479, 2147483648
    %v546 = vor.u32 1.1754944e-38, %v545
    %v547 = vsel %vm544, %v546, %v542
    %v548 = vrcp.pop %v481
    %v549 = vmul.f32 %v481, %v548
    %v550 = vsub.f32 1.0, %v549
    %v551 = vmul.f32 %v548, %v550
    %v552 = vadd.f32 %v548, %v551
    %vm553 = vweird.f32 %v481
    %vm554 = vweird.f32 %v548
    %vm555 = vmor %vm553, %vm554
    %v556 = vsel %vm555, %v548, %v552
    %v557 = vand.u32 2147483647, %v481
    %vm558 = vcmp.eq.f32.partialorder %v557, 8.507059e+37
    %v559 = vand.u32 %v481, 2147483648
    %v560 = vor.u32 1.1754944e-38, %v559
    %v561 = vsel %vm558, %v560, %v556
    %v562 = vrcp.pop %v483
    %v563 = vmul.f32 %v483, %v562
    %v564 = vsub.f32 1.0, %v563
    %v565 = vmul.f32 %v562, %v564
    %v566 = vadd.f32 %v562, %v565
    %vm567 = vweird.f32 %v483
    %vm568 = vweird.f32 %v562
    %vm569 = vmor %vm567, %vm568
    %v570 = vsel %vm569, %v562, %v566
    %v571 = vand.u32 2147483647, %v483
    %vm572 = vcmp.eq.f32.partialorder %v571, 8.507059e+37
    %v573 = vand.u32 %v483, 2147483648
    %v574 = vor.u32 1.1754944e-38, %v573
    %v575 = vsel %vm572, %v574, %v570
    %v576 = vrcp.pop %v485
    %v577 = vmul.f32 %v485, %v576
    %v578 = vsub.f32 1.0, %v577
    %v579 = vmul.f32 %v576, %v578
    %v580 = vadd.f32 %v576, %v579
    %vm581 = vweird.f32 %v485
    %vm582 = vweird.f32 %v576
    %vm583 = vmor %vm581, %vm582
    %v584 = vsel %vm583, %v576, %v580
    %v585 = vand.u32 2147483647, %v485
    %vm586 = vcmp.eq.f32.partialorder %v585, 8.507059e+37
    %v587 = vand.u32 %v485, 2147483648
    %v588 = vor.u32 1.1754944e-38, %v587
    %v589 = vsel %vm586, %v588, %v584
    %v590 = vrcp.pop %v487
    %v591 = vmul.f32 %v487, %v590
    %v592 = vsub.f32 1.0, %v591
    %v593 = vmul.f32 %v590, %v592
    %v594 = vadd.f32 %v590, %v593
    %vm595 = vweird.f32 %v487
    %vm596 = vweird.f32 %v590
    %vm597 = vmor %vm595, %vm596
    %v598 = vsel %vm597, %v590, %v594
    %v599 = vand.u32 2147483647, %v487
    %vm600 = vcmp.eq.f32.partialorder %v599, 8.507059e+37
    %v601 = vand.u32 %v487, 2147483648
    %v602 = vor.u32 1.1754944e-38, %v601
    %v603 = vsel %vm600, %v602, %v598
    %v604 = vrcp.pop %v489
    %v605 = vmul.f32 %v489, %v604
    %v606 = vsub.f32 1.0, %v605
    %v607 = vmul.f32 %v604, %v606
    %v608 = vadd.f32 %v604, %v607
    %vm609 = vweird.f32 %v489
    %vm610 = vweird.f32 %v604
    %vm611 = vmor %vm609, %vm610
    %v612 = vsel %vm611, %v604, %v608
    %v613 = vand.u32 2147483647, %v489
    %vm614 = vcmp.eq.f32.partialorder %v613, 8.507059e+37
    %v615 = vand.u32 %v489, 2147483648
    %v616 = vor.u32 1.1754944e-38, %v615
    %v617 = vsel %vm614, %v616, %v612
    %v618 = vrcp.pop %v491
    %v619 = vmul.f32 %v491, %v618
    %v620 = vsub.f32 1.0, %v619
    %v621 = vmul.f32 %v618, %v620
    %v622 = vadd.f32 %v618, %v621
    %vm623 = vweird.f32 %v491
    %vm624 = vweird.f32 %v618
    %vm625 = vmor %vm623, %vm624
    %v626 = vsel %vm625, %v618, %v622
    %v627 = vand.u32 2147483647, %v491
    %vm628 = vcmp.eq.f32.partialorder %v627, 8.507059e+37
    %v629 = vand.u32 %v491, 2147483648
    %v630 = vor.u32 1.1754944e-38, %v629
    %v631 = vsel %vm628, %v630, %v626
    %v632 = vrcp.pop %v493
    %v633 = vmul.f32 %v493, %v632
    %v634 = vsub.f32 1.0, %v633
    %v635 = vmul.f32 %v632, %v634
    %v636 = vadd.f32 %v632, %v635
    %vm637 = vweird.f32 %v493
    %vm638 = vweird.f32 %v632
    %vm639 = vmor %vm637, %vm638
    %v640 = vsel %vm639, %v632, %v636
    %v641 = vand.u32 2147483647, %v493
    %vm642 = vcmp.eq.f32.partialorder %v641, 8.507059e+37
    %v643 = vand.u32 %v493, 2147483648
    %v644 = vor.u32 1.1754944e-38, %v643
    %v645 = vsel %vm642, %v644, %v640
    %v646 = vrcp.pop %v495
    %v647 = vmul.f32 %v495, %v646
    %v648 = vsub.f32 1.0, %v647
    %v649 = vmul.f32 %v646, %v648
    %v650 = vadd.f32 %v646, %v649
    %vm651 = vweird.f32 %v495
    %vm652 = vweird.f32 %v646
    %vm653 = vmor %vm651, %vm652
    %v654 = vsel %vm653, %v646, %v650
    %v655 = vand.u32 2147483647, %v495
    %vm656 = vcmp.eq.f32.partialorder %v655, 8.507059e+37
    %v657 = vand.u32 %v495, 2147483648
    %v658 = vor.u32 1.1754944e-38, %v657
    %v659 = vsel %vm656, %v658, %v654
    %v660 = vrcp.pop %v497
    %v661 = vmul.f32 %v497, %v660
    %v662 = vsub.f32 1.0, %v661
    %v663 = vmul.f32 %v660, %v662
    %v664 = vadd.f32 %v660, %v663
    %vm665 = vweird.f32 %v497
    %vm666 = vweird.f32 %v660
    %vm667 = vmor %vm665, %vm666
    %v668 = vsel %vm667, %v660, %v664
    %v669 = vand.u32 2147483647, %v497
    %vm670 = vcmp.eq.f32.partialorder %v669, 8.507059e+37
    %v671 = vand.u32 %v497, 2147483648
    %v672 = vor.u32 1.1754944e-38, %v671
    %v673 = vsel %vm670, %v672, %v668
    %v674 = vrcp.pop %v499
    %v675 = vmul.f32 %v499, %v674
    %v676 = vsub.f32 1.0, %v675
    %v677 = vmul.f32 %v674, %v676
    %v678 = vadd.f32 %v674, %v677
    %vm679 = vweird.f32 %v499
    %vm680 = vweird.f32 %v674
    %vm681 = vmor %vm679, %vm680
    %v682 = vsel %vm681, %v674, %v678
    %v683 = vand.u32 2147483647, %v499
    %vm684 = vcmp.eq.f32.partialorder %v683, 8.507059e+37
    %v685 = vand.u32 %v499, 2147483648
    %v686 = vor.u32 1.1754944e-38, %v685
    %v687 = vsel %vm684, %v686, %v682
    %v688 = vrcp.pop %v501
    %v689 = vmul.f32 %v501, %v688
    %v690 = vsub.f32 1.0, %v689
    %v691 = vmul.f32 %v688, %v690
    %v692 = vadd.f32 %v688, %v691
    %vm693 = vweird.f32 %v501
    %vm694 = vweird.f32 %v688
    %vm695 = vmor %vm693, %vm694
    %v696 = vsel %vm695, %v688, %v692
    %v697 = vand.u32 2147483647, %v501
    %vm698 = vcmp.eq.f32.partialorder %v697, 8.507059e+37
    %v699 = vand.u32 %v501, 2147483648
    %v700 = vor.u32 1.1754944e-38, %v699
    %v701 = vsel %vm698, %v700, %v696
    %v702 = vrcp.pop %v503
    %v703 = vmul.f32 %v503, %v702
    %v704 = vsub.f32 1.0, %v703
    %v705 = vmul.f32 %v702, %v704
    %v706 = vadd.f32 %v702, %v705
    %vm707 = vweird.f32 %v503
    %vm708 = vweird.f32 %v702
    %vm709 = vmor %vm707, %vm708
    %v710 = vsel %vm709, %v702, %v706
    %v711 = vand.u32 2147483647, %v503
    %vm712 = vcmp.eq.f32.partialorder %v711, 8.507059e+37
    %v713 = vand.u32 %v503, 2147483648
    %v714 = vor.u32 1.1754944e-38, %v713
    %v715 = vsel %vm712, %v714, %v710
    %v716 = vrcp.pop %v505
    %v717 = vmul.f32 %v505, %v716
    %v718 = vsub.f32 1.0, %v717
    %v719 = vmul.f32 %v716, %v718
    %v720 = vadd.f32 %v716, %v719
    %vm721 = vweird.f32 %v505
    %vm722 = vweird.f32 %v716
    %vm723 = vmor %vm721, %vm722
    %v724 = vsel %vm723, %v716, %v720
    %v725 = vand.u32 2147483647, %v505
    %vm726 = vcmp.eq.f32.partialorder %v725, 8.507059e+37
    %v727 = vand.u32 %v505, 2147483648
    %v728 = vor.u32 1.1754944e-38, %v727
    %v729 = vsel %vm726, %v728, %v724
    %730 = vmatpush.msra.mxu0 %v197
    %731 = vmatpush.msra.mxu0 %v194
    %732 = vmatpush.msra.mxu0 %v191
    %733 = vmatpush.msra.mxu0 %v188
    %734 = vmatpush.msra.mxu0 %v185
    %735 = vmatpush.msra.mxu0 %v182
    %736 = vmatpush.msra.mxu0 %v179
    %737 = vmatpush.msra.mxu0 %v176
    %738 = vmatpush.msra.mxu0 %v173
    %739 = vmatpush.msra.mxu0 %v170
    %740 = vmatpush.msra.mxu0 %v167
    %741 = vmatpush.msra.mxu0 %v164
    %742 = vmatpush.msra.mxu0 %v161
    %743 = vmatpush.msra.mxu0 %v158
    %744 = vmatpush.msra.mxu0 %v155
    %745 = vmatpush.msra.mxu0 %v152
    %746 = vmatmul.f32.gmra.mxu0 %v443
    %v747 = vpop.f32.mrf.mxu0
    %v748 = vadd.f32 0.0, %v747
    %749 = vmatmul.f32.gmra.mxu0 %v445
    %v750 = vpop.f32.mrf.mxu0
    %v751 = vadd.f32 0.0, %v750
    %752 = vmatmul.f32.gmra.mxu0 %v447
    %v753 = vpop.f32.mrf.mxu0
    %v754 = vadd.f32 0.0, %v753
    %755 = vmatmul.f32.gmra.mxu0 %v449
    %v756 = vpop.f32.mrf.mxu0
    %v757 = vadd.f32 0.0, %v756
    %758 = vmatmul.f32.gmra.mxu0 %v451
    %v759 = vpop.f32.mrf.mxu0
    %v760 = vadd.f32 0.0, %v759
    %761 = vmatmul.f32.gmra.mxu0 %v453
    %v762 = vpop.f32.mrf.mxu0
    %v763 = vadd.f32 0.0, %v762
    %764 = vmatmul.f32.gmra.mxu0 %v455
    %v765 = vpop.f32.mrf.mxu0
    %v766 = vadd.f32 0.0, %v765
    %767 = vmatmul.f32.gmra.mxu0 %v457
    %v768 = vpop.f32.mrf.mxu0
    %v769 = vadd.f32 0.0, %v768
    %770 = vmatmul.f32.gmra.mxu0 %v459
    %v771 = vpop.f32.mrf.mxu0
    %v772 = vadd.f32 0.0, %v771
    %773 = vmatmul.f32.gmra.mxu0 %v461
    %v774 = vpop.f32.mrf.mxu0
    %v775 = vadd.f32 0.0, %v774
    %776 = vmatmul.f32.gmra.mxu0 %v463
    %v777 = vpop.f32.mrf.mxu0
    %v778 = vadd.f32 0.0, %v777
    %779 = vmatmul.f32.gmra.mxu0 %v465
    %v780 = vpop.f32.mrf.mxu0
    %v781 = vadd.f32 0.0, %v780
    %782 = vmatmul.f32.gmra.mxu0 %v467
    %v783 = vpop.f32.mrf.mxu0
    %v784 = vadd.f32 0.0, %v783
    %785 = vmatmul.f32.gmra.mxu0 %v469
    %v786 = vpop.f32.mrf.mxu0
    %v787 = vadd.f32 0.0, %v786
    %788 = vmatmul.f32.gmra.mxu0 %v471
    %v789 = vpop.f32.mrf.mxu0
    %v790 = vadd.f32 0.0, %v789
    %791 = vmatmul.f32.gmra.mxu0 %v473
    %v792 = vpop.f32.mrf.mxu0
    %v793 = vadd.f32 0.0, %v792
    %794 = vdwg.mxu0
    %v795 = vmul.f32 %v748, %v519
    %v796 = vmul.f32 %v751, %v533
    %v797 = vmul.f32 %v754, %v547
    %v798 = vmul.f32 %v757, %v561
    %v799 = vmul.f32 %v760, %v575
    %v800 = vmul.f32 %v763, %v589
    %v801 = vmul.f32 %v766, %v603
    %v802 = vmul.f32 %v769, %v617
    %v803 = vmul.f32 %v772, %v631
    %v804 = vmul.f32 %v775, %v645
    %v805 = vmul.f32 %v778, %v659
    %v806 = vmul.f32 %v781, %v673
    %v807 = vmul.f32 %v784, %v687
    %v808 = vmul.f32 %v787, %v701
    %v809 = vmul.f32 %v790, %v715
    %v810 = vmul.f32 %v793, %v729
    %811 = vst.msk [vmem:[#allocation7] sm:$0xff] %vm75, %v795
    %812 = vst.msk [vmem:[#allocation7 + $0x8] sm:$0xff] %vm75, %v796
    %813 = vst.msk [vmem:[#allocation7 + $0x10] sm:$0xff] %vm75, %v797
    %814 = vst.msk [vmem:[#allocation7 + $0x18] sm:$0xff] %vm75, %v798
    %815 = vst.msk [vmem:[#allocation7 + $0x20] sm:$0xff] %vm75, %v799
    %816 = vst.msk [vmem:[#allocation7 + $0x28] sm:$0xff] %vm75, %v800
    %817 = vst.msk [vmem:[#allocation7 + $0x30] sm:$0xff] %vm75, %v801
    %818 = vst.msk [vmem:[#allocation7 + $0x38] sm:$0xff] %vm75, %v802
    %819 = vst.msk [vmem:[#allocation7 + $0x40] sm:$0xff] %vm75, %v803
    %820 = vst.msk [vmem:[#allocation7 + $0x48] sm:$0xff] %vm75, %v804
    %821 = vst.msk [vmem:[#allocation7 + $0x50] sm:$0xff] %vm75, %v805
    %822 = vst.msk [vmem:[#allocation7 + $0x58] sm:$0xff] %vm75, %v806
    %823 = vst.msk [vmem:[#allocation7 + $0x60] sm:$0xff] %vm75, %v807
    %824 = vst.msk [vmem:[#allocation7 + $0x68] sm:$0xff] %vm75, %v808
    %825 = vst.msk [vmem:[#allocation7 + $0x70] sm:$0xff] %vm75, %v809
    %826 = vst.msk [vmem:[#allocation7 + $0x78] sm:$0xff] %vm75, %v810
    // Predicated region
    $region18: #{attention_forward.1} parent=1 // pred_check
      _
    $region19: #{attention_forward.1} parent=1 // pred_check_branch
      %828 = sbr.rel (0) target = $region21
    $region20: #{attention_forward.1} parent=1 // pred_region
      %830 = vsyncadd [#allocation4], 0
      %s831 = sshll.u32 [#allocation7], 4
      %s832 = int_to_ptr.vmem [resolvable:$true] %s831
      %s833 = sshll.u32 %s2, 4
      %s834 = int_to_ptr.hbm [resolvable:$true] %s833
      %839 = dma.vmem_to_hbm [thread:$0]  %s832, 2048, %s834, [#allocation4], 128, 128, 8
    $region21: #{attention_forward.1} parent=1 // pred_fallthru
      _
    // Predicated region
    $region22: #{attention_forward.1} parent=1 // pred_check
      _
    $region23: #{attention_forward.1} parent=1 // pred_check_branch
      %841 = sbr.rel (0) target = $region25
    $region24: #{attention_forward.1} parent=1 // pred_region
      %843 = dma.done [#allocation4], 2048
    $region25: #{attention_forward.1} parent=1 // pred_fallthru
      _
    %844 = vsyncpa [#allocation3], 1
    %845 = vsyncpa [#allocation6], 1
    %846 = vsyncpa [#allocation4], 1

</llo_original>
